<compile_context>
chip_gen: v7x
topology: tpu7x:2x2x1
jax: 0.10.0
libtpu: 0.0.40
codegen_flags: <defaults>
</compile_context>

<pallas_src>
import jax
import jax.numpy as jnp
import numpy as np
from jax.experimental import pallas as pl
from jax.experimental.pallas import tpu as pltpu

HIDDEN = 32
NUM_HEADS = 4
ATT = HIDDEN // NUM_HEADS          # 8
BIAS_H = 4
SCALE = ATT ** (-0.5)
B = 2
S = 8
N = B * S                          # 16 query rows
PK = B * NUM_HEADS * S             # 64 packed key lanes: c = b*32 + h*8 + j
QV = N + PK                        # 80 stacked [q | head-replicated v] rows
NEG = -1e9                         # cross-batch mask value

# ---- row offsets inside the packed input slabs (all multiples of 8) ----
# data slab (lane width 64)
D_X = 0                            # x_aug                rows [  0, 80)
D_KT = QV                          # kT replicated        rows [ 80,112)
D_DIST = D_KT + HIDDEN             # dist map tiled       rows [112,128)
D_CON = D_DIST + N                 # contact map tiled    rows [128,144)
D_LAB = D_CON + N                  # chain-label tiled    rows [144,160)
D_CB = D_LAB + N                   # c3 / -1e9 mask       rows [160,176)
D_TOT = D_CB + N                   # 176
# param64 slab (lane width 64)
P64_W = 0                          # [wv | wq*scale] + bias row   rows [  0, 64)
P64_HM = 2 * HIDDEN                # head mask for K^T            rows [ 64,128)
P64_KB = P64_HM + PK               # bk under head mask           rows [128,192)
P64_TOT = P64_KB + PK              # 192
# param32 slab (lane width 32)
P32_WKT = 0                        # [0 ; wk^T]                   rows [  0, 64)
P32_HBD = PK                       # head mask == group-sum       rows [ 64,128)
P32_WO = 2 * PK                    # wo                           rows [128,160)
P32_BO = P32_WO + HIDDEN           # bo                           row   160
P32_TOT = 168


# ----------------------------------------------------------------------------
# Single fused kernel (no grid): bias map + QKV projections + batched
# per-head attention (deferred-normalization softmax) + output projection.
# ----------------------------------------------------------------------------
def attn_kernel(coef_ref, data_ref, p64_ref, p32_ref, out_ref):
    f32 = jnp.float32

    # ---- packed data slab (sublane-aligned ref slices, zero-cost views) ----
    x_aug = data_ref[D_X:D_X + QV, :]           # (80,64) [q | v_rep], ones lane at 32
    kt_rep = data_ref[D_KT:D_KT + HIDDEN, :]    # (32,64) k^T, head-replicated, batch-blocked
    dist_t = data_ref[D_DIST:D_DIST + N, :]     # (16,64)
    con_t = data_ref[D_CON:D_CON + N, :]        # (16,64)
    lab_t = data_ref[D_LAB:D_LAB + N, :]        # (16,64)
    cbias_t = data_ref[D_CB:D_CB + N, :]        # (16,64) c3 same-batch, -1e9 cross-batch

    # ---- packed parameter slabs ----
    w_qv = p64_ref[P64_W:P64_W + 2 * HIDDEN, :]       # (64,64)
    hmask_kt = p64_ref[P64_HM:P64_HM + PK, :]         # (64,64) top half zero
    kbias_kt = p64_ref[P64_KB:P64_KB + PK, :]         # (64,64) top half zero
    wkt_pad = p32_ref[P32_WKT:P32_WKT + PK, :]        # (64,32) [0 ; wk^T]
    hmask_bd = p32_ref[P32_HBD:P32_HBD + PK, :]       # (64,32) head mask / group-sum
    wo = p32_ref[P32_WO:P32_WO + HIDDEN, :]           # (32,32)
    bo = p32_ref[P32_BO:P32_BO + 1, :]                # (1,32)

    # ---- fused Q / V projection: one MXU push (biases folded via ones lane) ----
    proj = jnp.dot(x_aug, w_qv, preferred_element_type=f32)            # (80,64)
    vbd = proj[N:QV, 0:HIDDEN] * hmask_bd                              # (64,32) head-block-diag V
    qf = proj[0:N, :]                                                  # (16,64) scaled Q in lanes 32:64

    # ---- K projected directly in transposed/packed-key orientation (no vxpose) ----
    kbdT = (jnp.dot(wkt_pad, kt_rep, preferred_element_type=f32)
            * hmask_kt + kbias_kt)                                     # (64,64)

    # ---- additive node bias (affine-collapsed MLPs) + cross-batch mask ----
    bias = (coef_ref[0] * dist_t + coef_ref[1] * con_t
            + coef_ref[2] * lab_t + cbias_t)                           # (16,64)

    # ---- scores for all (batch, head) blocks in one push ----
    s = jnp.dot(qf, kbdT, preferred_element_type=f32) + bias           # (16,64)

    # ---- softmax with deferred normalization (cross-batch lanes exp to 0) ----
    m = jnp.max(s, axis=-1, keepdims=True)      # shared per-row shift: exact for softmax
    p = jnp.exp(s - m)
    denom = jnp.dot(p, hmask_bd, preferred_element_type=f32)           # (16,32) per-head sums
    ctx_un = jnp.dot(p, vbd, preferred_element_type=f32)               # (16,32) unnormalized ctx
    ctx = ctx_un * pl.reciprocal(denom, approx=True)                   # EUP fast path

    # ---- output projection ----
    out_ref[...] = jnp.dot(ctx, wo, preferred_element_type=f32) + bo


# ----------------------------------------------------------------------------
# Wrapper: parameter/activation packing (layout plumbing only) + pallas_call
# ----------------------------------------------------------------------------
def node_mha_forward(params, int_chain_label, dist_map, contact_map, q, k, v):
    f32 = jnp.float32
    dist = dist_map.astype(f32)
    con = contact_map.astype(f32)
    lab = int_chain_label.astype(f32)

    # --- collapse the two purely-affine bias MLPs (2 -> BIAS_H -> 1) into 4 scalars ---
    w2d = params["w2_dis"][:, 0]
    w2c = params["w2_con"][:, 0]
    c0 = jnp.dot(params["w1_dis"][0], w2d)                                  # * dist
    c1 = jnp.dot(params["w1_con"][0], w2c)                                  # * contact
    c2 = jnp.dot(params["w1_dis"][1], w2d) + jnp.dot(params["w1_con"][1], w2c)  # * label
    c3 = (jnp.dot(params["b1_dis"], w2d) + params["b2_dis"][0]
          + jnp.dot(params["b1_con"], w2c) + params["b2_con"][0])
    coefs = jnp.stack([c0, c1, c2, c3]).astype(f32)          # kernel uses c0..c2

    # --- trace-time numpy mask constants (no in-kernel iota work) ---
    head32 = np.kron(np.eye(NUM_HEADS, dtype=np.float32),
                     np.ones((ATT, S), np.float32))          # (32,32) feature/head block mask
    hmask_T = np.tile(head32, (1, B))                        # (32,64)
    hmask_bd = np.tile(head32.T, (B, 1))                     # (64,32)  (== softmax group-sum)
    same16 = np.kron(np.eye(B, dtype=np.float32),
                     np.ones((S, NUM_HEADS * S), np.float32))  # (16,64) same-batch indicator

    # --- parameter packing (scale folded into wq/bq; biases via ones lane) ---
    w_qv_aug = jnp.concatenate([
        jnp.concatenate([params["wv"], params["wq"] * SCALE], axis=1),            # (32,64)
        jnp.concatenate([params["bv"], params["bq"] * SCALE]).reshape(1, 2 * HIDDEN),
        jnp.zeros((2 * HIDDEN - HIDDEN - 1, 2 * HIDDEN), f32),
    ], axis=0)                                                                    # (64,64)
    hmask_kt = jnp.concatenate([jnp.zeros((HIDDEN, PK), f32),
                                jnp.asarray(hmask_T)], axis=0)                    # (64,64)
    kbias_kt = jnp.concatenate([jnp.zeros((HIDDEN, PK), f32),
                                params["bk"][:, None] * hmask_T], axis=0)         # (64,64)
    param64 = jnp.concatenate([w_qv_aug, hmask_kt, kbias_kt], axis=0).astype(f32)  # (192,64)

    wkt_pad = jnp.concatenate([jnp.zeros((HIDDEN, HIDDEN), f32),
                               params["wk"].T], axis=0)                           # (64,32)
    param32 = jnp.concatenate([
        wkt_pad,                                       # rows   0: 64
        jnp.asarray(hmask_bd),                         # rows  64:128
        params["wo"].astype(f32),                      # rows 128:160
        params["bo"].reshape(1, HIDDEN).astype(f32),   # row  160
        jnp.zeros((P32_TOT - P32_BO - 1, HIDDEN), f32),
    ], axis=0).astype(f32)                             # (168,32)

    # --- activation packing (layout plumbing) ---
    q_flat = q.astype(f32).reshape(N, HIDDEN)
    v_rep = jnp.broadcast_to(v.astype(f32).reshape(B, 1, S, HIDDEN),
                             (B, NUM_HEADS, S, HIDDEN)).reshape(PK, HIDDEN)
    x_aug = jnp.concatenate([jnp.concatenate([q_flat, v_rep], axis=0),
                             jnp.ones((QV, 1), f32),
                             jnp.zeros((QV, HIDDEN - 1), f32)], axis=1)           # (80,64)
    kt = k.astype(f32).reshape(N, HIDDEN).T.reshape(HIDDEN, B, S)
    kt_rep = jnp.broadcast_to(kt[:, :, None, :],
                              (HIDDEN, B, NUM_HEADS, S)).reshape(HIDDEN, PK)      # (32,64)

    # --- pre-tiled, lane-dense bias maps (batch-block-diag, head-replicated) ---
    eyeB = jnp.eye(B, dtype=f32)
    dist_t = jnp.kron(eyeB, jnp.tile(dist, (1, NUM_HEADS)))                       # (16,64)
    con_t = jnp.kron(eyeB, jnp.tile(con, (1, NUM_HEADS)))                         # (16,64)
    lab_t = jnp.kron(eyeB, jnp.tile(lab, (1, NUM_HEADS)))                         # (16,64)
    cbias_t = c3 * same16 + NEG * (1.0 - same16)                                  # (16,64)

    data64 = jnp.concatenate([x_aug, kt_rep, dist_t, con_t, lab_t, cbias_t],
                             axis=0).astype(f32)                                  # (176,64)

    smem = pl.BlockSpec(memory_space=pltpu.MemorySpace.SMEM)
    vmem = pl.BlockSpec(memory_space=pltpu.MemorySpace.VMEM)
    out = pl.pallas_call(
        attn_kernel,
        out_shape=jax.ShapeDtypeStruct((N, HIDDEN), f32),
        in_specs=[smem, vmem, vmem, vmem],
        out_specs=vmem,
    )(coefs, data64, param64, param32)
    return out.reshape(B, S, HIDDEN)


# ----------------------------------------------------------------------------
# Pure-JAX reference (mirrors the PyTorch forward exactly), used for checking
# ----------------------------------------------------------------------------
def reference_forward(params, int_chain_label, dist_map, contact_map, q, k, v):
    f32 = jnp.float32
    lab = int_chain_label.astype(f32)
    dist = dist_map.astype(f32)
    con = contact_map.astype(f32)

    def enc(m, w1, b1, w2, b2):
        x = jnp.stack((m, lab), axis=-1)                  # (S, S, 2)
        x = x @ w1 + b1                                   # (S, S, BIAS_H)
        x = (x @ w2 + b2)[..., 0]                         # (S, S)
        return x[None, None]                              # (1, 1, S, S)

    attn_bias = (enc(dist, params["w1_dis"], params["b1_dis"],
                     params["w2_dis"], params["b2_dis"]) +
                 enc(con, params["w1_con"], params["b1_con"],
                     params["w2_con"], params["b2_con"]))

    Q = q.astype(f32) @ params["wq"] + params["bq"]
    K = k.astype(f32) @ params["wk"] + params["bk"]
    V = v.astype(f32) @ params["wv"] + params["bv"]
    Q = Q.reshape(B, -1, NUM_HEADS, ATT).transpose(0, 2, 1, 3) * SCALE
    K = K.reshape(B, -1, NUM_HEADS, ATT).transpose(0, 2, 3, 1)
    V = V.reshape(B, -1, NUM_HEADS, ATT).transpose(0, 2, 1, 3)
    x = Q @ K + attn_bias
    x = jax.nn.softmax(x, axis=3)
    x = x @ V
    x = x.transpose(0, 2, 1, 3).reshape(B, -1, NUM_HEADS * ATT)
    return x @ params["wo"] + params["bo"]


# ----------------------------------------------------------------------------
# Deterministic parameter init (mimics nn.Linear default init; weights stored
# as (in, out) so y = x @ W + b)
# ----------------------------------------------------------------------------
def init_params(key):
    def linear(kk, fan_in, fan_out):
        k1, k2 = jax.random.split(kk)
        bound = 1.0 / np.sqrt(fan_in)
        w = jax.random.uniform(k1, (fan_in, fan_out), jnp.float32, -bound, bound)
        b = jax.random.uniform(k2, (fan_out,), jnp.float32, -bound, bound)
        return w, b

    keys = jax.random.split(key, 8)
    p = {}
    p["wq"], p["bq"] = linear(keys[0], HIDDEN, HIDDEN)
    p["wk"], p["bk"] = linear(keys[1], HIDDEN, HIDDEN)
    p["wv"], p["bv"] = linear(keys[2], HIDDEN, HIDDEN)
    p["wo"], p["bo"] = linear(keys[3], HIDDEN, HIDDEN)
    p["w1_dis"], p["b1_dis"] = linear(keys[4], 2, BIAS_H)
    p["w2_dis"], p["b2_dis"] = linear(keys[5], BIAS_H, 1)
    p["w1_con"], p["b1_con"] = linear(keys[6], 2, BIAS_H)
    p["w2_con"], p["b2_con"] = linear(keys[7], BIAS_H, 1)
    return p


if __name__ == "__main__":
    key = jax.random.PRNGKey(0)
    kp, k1, k2, k3, k4, k5, k6 = jax.random.split(key, 7)

    params = init_params(kp)

    int_chain_label = (jax.random.uniform(k1, (S, S)) > 0.5).astype(jnp.int32)
    dist_map = jax.random.uniform(k2, (S, S), jnp.float32) * 10.0
    contact_map = (jax.random.uniform(k3, (S, S)) > 0.7).astype(jnp.int32)
    q = jax.random.normal(k4, (B, S, HIDDEN), jnp.float32)
    k = jax.random.normal(k5, (B, S, HIDDEN), jnp.float32)
    v = jax.random.normal(k6, (B, S, HIDDEN), jnp.float32)

    fwd = jax.jit(node_mha_forward)
    out = fwd(params, int_chain_label, dist_map, contact_map, q, k, v)
    out = jax.block_until_ready(out)

    ref = reference_forward(params, int_chain_label, dist_map, contact_map, q, k, v)
    # approx reciprocal (EUP fast path) + deferred normalization change rounding
    # order slightly -> tolerance loosened marginally vs 1e-4.
    np.testing.assert_allclose(np.asarray(out), np.asarray(ref), rtol=1e-3, atol=1e-3)

    assert out.shape == (B, S, HIDDEN)
    print("KERNEL_OK")
</pallas_src>

<mosaic_0001>
module attributes {stable_mosaic.version = 11 : i64} {
  func.func @attn_kernel(%arg0: memref<4xf32, #tpu.memory_space<smem>>, %arg1: memref<176x64xf32, #tpu.memory_space<vmem>>, %arg2: memref<192x64xf32, #tpu.memory_space<vmem>>, %arg3: memref<168x32xf32, #tpu.memory_space<vmem>>, %arg4: memref<16x32xf32, #tpu.memory_space<vmem>>) attributes {dimension_semantics = [], scalar_prefetch = 0 : i64, scratch_operands = 0 : i64, tpu.core_type = #tpu.core_type<tc>} {
    %c0 = arith.constant 0 : index
    %c0_0 = arith.constant 0 : index
    %0 = vector.load %arg1[%c0, %c0_0] : memref<176x64xf32, #tpu.memory_space<vmem>>, vector<80x64xf32>
    %c80 = arith.constant 80 : index
    %c0_1 = arith.constant 0 : index
    %1 = vector.load %arg1[%c80, %c0_1] : memref<176x64xf32, #tpu.memory_space<vmem>>, vector<32x64xf32>
    %c112 = arith.constant 112 : index
    %c0_2 = arith.constant 0 : index
    %2 = vector.load %arg1[%c112, %c0_2] : memref<176x64xf32, #tpu.memory_space<vmem>>, vector<16x64xf32>
    %c128 = arith.constant 128 : index
    %c0_3 = arith.constant 0 : index
    %3 = vector.load %arg1[%c128, %c0_3] : memref<176x64xf32, #tpu.memory_space<vmem>>, vector<16x64xf32>
    %c144 = arith.constant 144 : index
    %c0_4 = arith.constant 0 : index
    %4 = vector.load %arg1[%c144, %c0_4] : memref<176x64xf32, #tpu.memory_space<vmem>>, vector<16x64xf32>
    %c160 = arith.constant 160 : index
    %c0_5 = arith.constant 0 : index
    %5 = vector.load %arg1[%c160, %c0_5] : memref<176x64xf32, #tpu.memory_space<vmem>>, vector<16x64xf32>
    %c0_6 = arith.constant 0 : index
    %c0_7 = arith.constant 0 : index
    %6 = vector.load %arg2[%c0_6, %c0_7] : memref<192x64xf32, #tpu.memory_space<vmem>>, vector<64x64xf32>
    %c64 = arith.constant 64 : index
    %c0_8 = arith.constant 0 : index
    %7 = vector.load %arg2[%c64, %c0_8] : memref<192x64xf32, #tpu.memory_space<vmem>>, vector<64x64xf32>
    %c128_9 = arith.constant 128 : index
    %c0_10 = arith.constant 0 : index
    %8 = vector.load %arg2[%c128_9, %c0_10] : memref<192x64xf32, #tpu.memory_space<vmem>>, vector<64x64xf32>
    %c0_11 = arith.constant 0 : index
    %c0_12 = arith.constant 0 : index
    %9 = vector.load %arg3[%c0_11, %c0_12] : memref<168x32xf32, #tpu.memory_space<vmem>>, vector<64x32xf32>
    %c64_13 = arith.constant 64 : index
    %c0_14 = arith.constant 0 : index
    %10 = vector.load %arg3[%c64_13, %c0_14] : memref<168x32xf32, #tpu.memory_space<vmem>>, vector<64x32xf32>
    %c128_15 = arith.constant 128 : index
    %c0_16 = arith.constant 0 : index
    %11 = vector.load %arg3[%c128_15, %c0_16] : memref<168x32xf32, #tpu.memory_space<vmem>>, vector<32x32xf32>
    %c160_17 = arith.constant 160 : index
    %c0_18 = arith.constant 0 : index
    %12 = vector.load %arg3[%c160_17, %c0_18] : memref<168x32xf32, #tpu.memory_space<vmem>>, vector<1x32xf32>
    %cst = arith.constant dense<0.000000e+00> : vector<80x64xf32>
    %13 = tpu.matmul %0, %6, %cst {dimension_numbers = #tpu.dot_dimension_numbers<[1], [0], [0], [1], [0, 0, 1, 1], [], []>} : vector<80x64xf32>, vector<64x64xf32>, vector<80x64xf32> -> vector<80x64xf32>
    %14 = vector.extract_strided_slice %13 {offsets = [16, 0], sizes = [64, 32], strides = [1, 1]} : vector<80x64xf32> to vector<64x32xf32>
    %15 = arith.mulf %14, %10 : vector<64x32xf32>
    %16 = vector.extract_strided_slice %13 {offsets = [0, 0], sizes = [16, 64], strides = [1, 1]} : vector<80x64xf32> to vector<16x64xf32>
    %cst_19 = arith.constant dense<0.000000e+00> : vector<64x64xf32>
    %17 = tpu.matmul %9, %1, %cst_19 {dimension_numbers = #tpu.dot_dimension_numbers<[1], [0], [0], [1], [0, 0, 1, 1], [], []>} : vector<64x32xf32>, vector<32x64xf32>, vector<64x64xf32> -> vector<64x64xf32>
    %18 = arith.mulf %17, %7 : vector<64x64xf32>
    %19 = arith.addf %18, %8 : vector<64x64xf32>
    %c0_20 = arith.constant 0 : index
    %20 = memref.load %arg0[%c0_20] : memref<4xf32, #tpu.memory_space<smem>>
    %21 = vector.broadcast %20 : f32 to vector<16x64xf32>
    %22 = arith.mulf %21, %2 : vector<16x64xf32>
    %c1 = arith.constant 1 : index
    %23 = memref.load %arg0[%c1] : memref<4xf32, #tpu.memory_space<smem>>
    %24 = vector.broadcast %23 : f32 to vector<16x64xf32>
    %25 = arith.mulf %24, %3 : vector<16x64xf32>
    %26 = arith.addf %22, %25 : vector<16x64xf32>
    %c2 = arith.constant 2 : index
    %27 = memref.load %arg0[%c2] : memref<4xf32, #tpu.memory_space<smem>>
    %28 = vector.broadcast %27 : f32 to vector<16x64xf32>
    %29 = arith.mulf %28, %4 : vector<16x64xf32>
    %30 = arith.addf %26, %29 : vector<16x64xf32>
    %31 = arith.addf %30, %5 : vector<16x64xf32>
    %cst_21 = arith.constant dense<0.000000e+00> : vector<16x64xf32>
    %32 = tpu.matmul %16, %19, %cst_21 {dimension_numbers = #tpu.dot_dimension_numbers<[1], [0], [0], [1], [0, 0, 1, 1], [], []>} : vector<16x64xf32>, vector<64x64xf32>, vector<16x64xf32> -> vector<16x64xf32>
    %33 = arith.addf %32, %31 : vector<16x64xf32>
    %cst_22 = arith.constant dense<0xFF800000> : vector<16xf32>
    %34 = vector.multi_reduction <maximumf>, %33, %cst_22 [1] : vector<16x64xf32> to vector<16xf32>
    %35 = vector.shape_cast %34 : vector<16xf32> to vector<16x1xf32>
    %36 = vector.broadcast %35 : vector<16x1xf32> to vector<16x64xf32>
    %37 = arith.subf %33, %36 : vector<16x64xf32>
    %38 = math.exp %37 : vector<16x64xf32>
    %cst_23 = arith.constant dense<0.000000e+00> : vector<16x32xf32>
    %39 = tpu.matmul %38, %10, %cst_23 {dimension_numbers = #tpu.dot_dimension_numbers<[1], [0], [0], [1], [0, 0, 1, 1], [], []>} : vector<16x64xf32>, vector<64x32xf32>, vector<16x32xf32> -> vector<16x32xf32>
    %cst_24 = arith.constant dense<0.000000e+00> : vector<16x32xf32>
    %40 = tpu.matmul %38, %15, %cst_24 {dimension_numbers = #tpu.dot_dimension_numbers<[1], [0], [0], [1], [0, 0, 1, 1], [], []>} : vector<16x64xf32>, vector<64x32xf32>, vector<16x32xf32> -> vector<16x32xf32>
    %41 = tpu.reciprocal %39 {approx = true} : vector<16x32xf32> -> vector<16x32xf32>
    %42 = arith.mulf %40, %41 : vector<16x32xf32>
    %cst_25 = arith.constant dense<0.000000e+00> : vector<16x32xf32>
    %43 = tpu.matmul %42, %11, %cst_25 {dimension_numbers = #tpu.dot_dimension_numbers<[1], [0], [0], [1], [0, 0, 1, 1], [], []>} : vector<16x32xf32>, vector<32x32xf32>, vector<16x32xf32> -> vector<16x32xf32>
    %44 = vector.broadcast %12 : vector<1x32xf32> to vector<16x32xf32>
    %45 = arith.addf %43, %44 : vector<16x32xf32>
    %c0_26 = arith.constant 0 : index
    %c0_27 = arith.constant 0 : index
    %46 = vector.load %arg4[%c0_26, %c0_27] : memref<16x32xf32, #tpu.memory_space<vmem>>, vector<16x32xf32>
    tpu.vector_store %arg4[%c0_26, %c0_27], %45 {strides = array<i32>} : memref<16x32xf32, #tpu.memory_space<vmem>>, vector<16x32xf32>,
    return
  }
}

</mosaic_0001>

<llo_original>
// kernel: node_mha_forward.1
$region0: #{node_mha_forward.1}
  #allocation0 [shape = 'u32[]', space=smem, size = 0x4, offset = 0x4, fixed_abs, tag = 'smem constant byte address 0x4 - core index']
  #allocation1 [shape = 'u32[144,128]{1,0:T(1,128)}', space=vmem, size = 0x12000, scoped, tag = 'internal scratch']
  %s0 = inlined_call_operand.vmem [shape: f32[4], index: 0, kind: input, shape index: {}]
  %s1 = inlined_call_operand.vmem [shape: f32[176,64], index: 1, kind: input, shape index: {}]
  %s2 = inlined_call_operand.vmem [shape: f32[192,64], index: 2, kind: input, shape index: {}]
  %s3 = inlined_call_operand.vmem [shape: f32[168,32], index: 3, kind: input, shape index: {}]
  %s4 = inlined_call_operand.hbm [shape: f32[16,32], index: 4, kind: output, shape index: {}]
  %s5 = sld [smem:[#allocation0]]
  $region30: #{node_mha_forward.1} parent=0
    _
  %s7 = ssub.s32 1, %s5
  %s8 = scalar_select 0, %s7, %s5
  $region1: #{node_mha_forward.1} parent=0
    #allocation2 [shape = 'u8[512]{0}', space=smem, size = 0x200, scoped, tag = 'input window, operand 0, single buffered']
    #allocation3 [shape = 's32[1]{0}', space=sflag, size = 0x4, scoped, tag = 'scoped memory for node_mha_forward.1']
    #allocation4 [shape = 's32[1]{0}', space=sflag, size = 0x4, scoped, tag = 'scoped memory for node_mha_forward.1']
    #allocation5 [shape = 'u8[8192]{0}', space=vmem, size = 0x2000, scoped, tag = 'output window, operand 0, single buffered']
    %9 = vsyncpa [#allocation4], 0
    %10 = vsyncpa [#allocation3], 0
    // Predicated region
    $region2: #{node_mha_forward.1} parent=1 // pred_check
      _
    $region3: #{node_mha_forward.1} parent=1 // pred_check_branch
      %12 = sbr.rel (0) target = $region5
    $region4: #{node_mha_forward.1} parent=1 // pred_region
      %s14 = ssub.s32 16, 16
      %15 = vsyncadd [#allocation4], %s14
      %s17 = sshll.u32 %s0, 4
      %s18 = int_to_ptr.vmem [resolvable:$true] %s17
      %20 = dma.vmem_to_smem %s18, 16, [#allocation2], [#allocation4]
    $region5: #{node_mha_forward.1} parent=1 // pred_fallthru
      _
    // Predicated region
    $region6: #{node_mha_forward.1} parent=1 // pred_check
      _
    $region7: #{node_mha_forward.1} parent=1 // pred_check_branch
      %22 = sbr.rel (0) target = $region9
    $region8: #{node_mha_forward.1} parent=1 // pred_region
      _
    $region9: #{node_mha_forward.1} parent=1 // pred_fallthru
      _
    // Predicated region
    $region10: #{node_mha_forward.1} parent=1 // pred_check
      _
    $region11: #{node_mha_forward.1} parent=1 // pred_check_branch
      %24 = sbr.rel (0) target = $region13
    $region12: #{node_mha_forward.1} parent=1 // pred_region
      _
    $region13: #{node_mha_forward.1} parent=1 // pred_fallthru
      _
    // Predicated region
    $region14: #{node_mha_forward.1} parent=1 // pred_check
      _
    $region15: #{node_mha_forward.1} parent=1 // pred_check_branch
      %26 = sbr.rel (0) target = $region17
    $region16: #{node_mha_forward.1} parent=1 // pred_region
      _
    $region17: #{node_mha_forward.1} parent=1 // pred_fallthru
      _
    // Predicated region
    $region18: #{node_mha_forward.1} parent=1 // pred_check
      _
    $region19: #{node_mha_forward.1} parent=1 // pred_check_branch
      %28 = sbr.rel (0) target = $region21
    $region20: #{node_mha_forward.1} parent=1 // pred_region
      %29 = dma.done [#allocation4], 16
    $region21: #{node_mha_forward.1} parent=1 // pred_fallthru
      _
    %30 = sfence
    %v31 = vld [vmem:[%s1] sm:$0xff]
    %v32 = vld [vmem:[%s1 + $0x8] sm:$0xff]
    %v33 = vld [vmem:[%s1 + $0x10] sm:$0xff]
    %v34 = vld [vmem:[%s1 + $0x18] sm:$0xff]
    %v35 = vld [vmem:[%s1 + $0x20] sm:$0xff]
    %v36 = vld [vmem:[%s1 + $0x28] sm:$0xff]
    %v37 = vld [vmem:[%s1 + $0x30] sm:$0xff]
    %v38 = vld [vmem:[%s1 + $0x38] sm:$0xff]
    %v39 = vld [vmem:[%s1 + $0x40] sm:$0xff]
    %v40 = vld [vmem:[%s1 + $0x48] sm:$0xff]
    %v41 = vld [vmem:[%s1 + $0x50] sm:$0xff]
    %v42 = vld [vmem:[%s1 + $0x58] sm:$0xff]
    %v43 = vld [vmem:[%s1 + $0x60] sm:$0xff]
    %v44 = vld [vmem:[%s1 + $0x68] sm:$0xff]
    %v45 = vld [vmem:[%s1 + $0x70] sm:$0xff]
    %v46 = vld [vmem:[%s1 + $0x78] sm:$0xff]
    %v47 = vld [vmem:[%s1 + $0x80] sm:$0xff]
    %v48 = vld [vmem:[%s1 + $0x88] sm:$0xff]
    %v49 = vld [vmem:[%s1 + $0x90] sm:$0xff]
    %v50 = vld [vmem:[%s1 + $0x98] sm:$0xff]
    %v51 = vld [vmem:[%s1 + $0xa0] sm:$0xff]
    %v52 = vld [vmem:[%s1 + $0xa8] sm:$0xff]
    %v53 = vld [vmem:[%s2] sm:$0xff]
    %v54 = vld [vmem:[%s2 + $0x8] sm:$0xff]
    %v55 = vld [vmem:[%s2 + $0x10] sm:$0xff]
    %v56 = vld [vmem:[%s2 + $0x18] sm:$0xff]
    %v57 = vld [vmem:[%s2 + $0x20] sm:$0xff]
    %v58 = vld [vmem:[%s2 + $0x28] sm:$0xff]
    %v59 = vld [vmem:[%s2 + $0x30] sm:$0xff]
    %v60 = vld [vmem:[%s2 + $0x38] sm:$0xff]
    %v61 = vld [vmem:[%s2 + $0x40] sm:$0xff]
    %v62 = vld [vmem:[%s2 + $0x48] sm:$0xff]
    %v63 = vld [vmem:[%s2 + $0x50] sm:$0xff]
    %v64 = vld [vmem:[%s2 + $0x58] sm:$0xff]
    %v65 = vld [vmem:[%s2 + $0x60] sm:$0xff]
    %v66 = vld [vmem:[%s2 + $0x68] sm:$0xff]
    %v67 = vld [vmem:[%s2 + $0x70] sm:$0xff]
    %v68 = vld [vmem:[%s2 + $0x78] sm:$0xff]
    %v69 = vld [vmem:[%s2 + $0x80] sm:$0xff]
    %v70 = vld [vmem:[%s2 + $0x88] sm:$0xff]
    %v71 = vld [vmem:[%s2 + $0x90] sm:$0xff]
    %v72 = vld [vmem:[%s2 + $0x98] sm:$0xff]
    %v73 = vld [vmem:[%s2 + $0xa0] sm:$0xff]
    %v74 = vld [vmem:[%s2 + $0xa8] sm:$0xff]
    %v75 = vld [vmem:[%s2 + $0xb0] sm:$0xff]
    %v76 = vld [vmem:[%s2 + $0xb8] sm:$0xff]
    %v77 = vld [vmem:[%s3] sm:$0xff]
    %v78 = vld [vmem:[%s3 + $0x8] sm:$0xff]
    %v79 = vld [vmem:[%s3 + $0x10] sm:$0xff]
    %v80 = vld [vmem:[%s3 + $0x18] sm:$0xff]
    %v81 = vld [vmem:[%s3 + $0x20] sm:$0xff]
    %v82 = vld [vmem:[%s3 + $0x28] sm:$0xff]
    %v83 = vld [vmem:[%s3 + $0x30] sm:$0xff]
    %v84 = vld [vmem:[%s3 + $0x38] sm:$0xff]
    %v85 = vld [vmem:[%s3 + $0x40] sm:$0xff]
    %v86 = vld [vmem:[%s3 + $0x48] sm:$0xff]
    %v87 = vld [vmem:[%s3 + $0x50] sm:$0xff]
    %v88 = vld [vmem:[%s3 + $0x58] sm:$0xff]
    %v89 = vld [vmem:[%s3 + $0x60] sm:$0xff]
    %v90 = vld [vmem:[%s3 + $0x68] sm:$0xff]
    %v91 = vld [vmem:[%s3 + $0x70] sm:$0xff]
    %v92 = vld [vmem:[%s3 + $0x78] sm:$0xff]
    %v93 = vld [vmem:[%s3 + $0x80] sm:$0xff]
    %v94 = vld [vmem:[%s3 + $0x88] sm:$0xff]
    %v95 = vld [vmem:[%s3 + $0x90] sm:$0xff]
    %v96 = vld [vmem:[%s3 + $0x98] sm:$0xff]
    %v97 = vld [vmem:[%s3 + $0xa0] sm:$0x1]
    %vm98 = vcmask 523264
    %v100 = vsel %vm98, %v31, 0
    %v103 = vsel %vm98, %v32, 0
    %v106 = vsel %vm98, %v33, 0
    %v109 = vsel %vm98, %v34, 0
    %v112 = vsel %vm98, %v35, 0
    %v115 = vsel %vm98, %v36, 0
    %v118 = vsel %vm98, %v37, 0
    %v121 = vsel %vm98, %v38, 0
    %v124 = vsel %vm98, %v39, 0
    %v127 = vsel %vm98, %v40, 0
    %129 = vmatprep.subr.mxu0 0.0
    %130 = vmatpush1.msra.mxu0 %v53
    %131 = vmatprep.subr.mxu0 0.0
    %132 = vmatpush1.msra.mxu0 %v54
    %133 = vmatprep.subr.mxu0 0.0
    %134 = vmatpush1.msra.mxu0 %v55
    %135 = vmatprep.subr.mxu0 0.0
    %136 = vmatpush1.msra.mxu0 %v56
    %137 = vmatprep.subr.mxu0 0.0
    %138 = vmatpush1.msra.mxu0 %v57
    %139 = vmatprep.subr.mxu0 0.0
    %140 = vmatpush1.msra.mxu0 %v58
    %141 = vmatprep.subr.mxu0 0.0
    %142 = vmatpush1.msra.mxu0 %v59
    %143 = vmatprep.subr.mxu0 0.0
    %144 = vmatpush1.msra.mxu0 %v60
    %145 = vmatprep.subr.mxu0 0.0
    %146 = vmatpush1.msra.mxu0 0.0
    %147 = vmatprep.subr.mxu0 0.0
    %148 = vmatpush1.msra.mxu0 0.0
    %149 = vmatprep.subr.mxu0 0.0
    %150 = vmatpush1.msra.mxu0 0.0
    %151 = vmatprep.subr.mxu0 0.0
    %152 = vmatpush1.msra.mxu0 0.0
    %153 = vmatprep.subr.mxu0 0.0
    %154 = vmatpush1.msra.mxu0 0.0
    %155 = vmatprep.subr.mxu0 0.0
    %156 = vmatpush1.msra.mxu0 0.0
    %157 = vmatprep.subr.mxu0 0.0
    %158 = vmatpush1.msra.mxu0 0.0
    %159 = vmatprep.subr.mxu0 0.0
    %160 = vmatpush1.msra.mxu0 0.0
    %161 = vmatprep.subr.mxu0 0.0
    %162 = vmatpush1.msra.mxu0 0.0
    %163 = vmatprep.subr.mxu0 0.0
    %164 = vmatpush1.msra.mxu0 0.0
    %165 = vmatprep.subr.mxu0 0.0
    %166 = vmatpush1.msra.mxu0 0.0
    %167 = vmatprep.subr.mxu0 0.0
    %168 = vmatpush1.msra.mxu0 0.0
    %169 = vmatprep.subr.mxu0 0.0
    %170 = vmatpush1.msra.mxu0 0.0
    %171 = vmatprep.subr.mxu0 0.0
    %172 = vmatpush1.msra.mxu0 0.0
    %173 = vmatprep.subr.mxu0 0.0
    %174 = vmatpush1.msra.mxu0 0.0
    %175 = vmatprep.subr.mxu0 0.0
    %176 = vmatpush1.msra.mxu0 0.0
    %177 = vmatprep.subr.mxu0 0.0
    %178 = vmatpush1.msra.mxu0 0.0
    %179 = vmatprep.subr.mxu0 0.0
    %180 = vmatpush1.msra.mxu0 0.0
    %181 = vmatprep.subr.mxu0 0.0
    %182 = vmatpush1.msra.mxu0 0.0
    %183 = vmatprep.subr.mxu0 0.0
    %184 = vmatpush1.msra.mxu0 0.0
    %185 = vmatprep.subr.mxu0 0.0
    %186 = vmatpush1.msra.mxu0 0.0
    %187 = vmatprep.subr.mxu0 0.0
    %188 = vmatpush1.msra.mxu0 0.0
    %189 = vmatprep.subr.mxu0 0.0
    %190 = vmatpush1.msra.mxu0 0.0
    %191 = vmatprep.subr.mxu0 0.0
    %192 = vmatpush1.msra.mxu0 0.0
    %193 = vmatprep.mubr.f32.mxu0 0.0
    %194 = vmatmul.mubr.f32.gmra.mrb[0].mxu0 %v100
    %v195 = vpop.f32.mrb[0].mxu0
    %v196 = vadd.f32 0.0, %v195
    %v197 = vpop.f32.mrb[0].mxu0
    %198 = vmatprep.mubr.f32.mxu0 0.0
    %199 = vmatmul.mubr.f32.gmra.mrb[0].mxu0 %v103
    %v200 = vpop.f32.mrb[0].mxu0
    %v201 = vadd.f32 0.0, %v200
    %v202 = vpop.f32.mrb[0].mxu0
    %203 = vmatprep.mubr.f32.mxu0 0.0
    %204 = vmatmul.mubr.f32.gmra.mrb[0].mxu0 %v106
    %v205 = vpop.f32.mrb[0].mxu0
    %v206 = vadd.f32 0.0, %v205
    %v207 = vpop.f32.mrb[0].mxu0
    %208 = vmatprep.mubr.f32.mxu0 0.0
    %209 = vmatmul.mubr.f32.gmra.mrb[0].mxu0 %v109
    %v210 = vpop.f32.mrb[0].mxu0
    %v211 = vadd.f32 0.0, %v210
    %v212 = vpop.f32.mrb[0].mxu0
    %213 = vmatprep.mubr.f32.mxu0 0.0
    %214 = vmatmul.mubr.f32.gmra.mrb[0].mxu0 %v112
    %v215 = vpop.f32.mrb[0].mxu0
    %v216 = vadd.f32 0.0, %v215
    %v217 = vpop.f32.mrb[0].mxu0
    %218 = vmatprep.mubr.f32.mxu0 0.0
    %219 = vmatmul.mubr.f32.gmra.mrb[0].mxu0 %v115
    %v220 = vpop.f32.mrb[0].mxu0
    %v221 = vadd.f32 0.0, %v220
    %v222 = vpop.f32.mrb[0].mxu0
    %223 = vmatprep.mubr.f32.mxu0 0.0
    %224 = vmatmul.mubr.f32.gmra.mrb[0].mxu0 %v118
    %v225 = vpop.f32.mrb[0].mxu0
    %v226 = vadd.f32 0.0, %v225
    %v227 = vpop.f32.mrb[0].mxu0
    %228 = vmatprep.mubr.f32.mxu0 0.0
    %229 = vmatmul.mubr.f32.gmra.mrb[0].mxu0 %v121
    %v230 = vpop.f32.mrb[0].mxu0
    %v231 = vadd.f32 0.0, %v230
    %v232 = vpop.f32.mrb[0].mxu0
    %233 = vmatprep.mubr.f32.mxu0 0.0
    %234 = vmatmul.mubr.f32.gmra.mrb[0].mxu0 %v124
    %v235 = vpop.f32.mrb[0].mxu0
    %v236 = vadd.f32 0.0, %v235
    %v237 = vpop.f32.mrb[0].mxu0
    %238 = vmatprep.mubr.f32.mxu0 0.0
    %239 = vmatmul.mubr.f32.gmra.mrb[0].mxu0 %v127
    %v240 = vpop.f32.mrb[0].mxu0
    %v241 = vadd.f32 0.0, %v240
    %v242 = vpop.f32.mrb[0].mxu0
    %243 = vdwg.mxu0
    %v244 = vmul.f32 %v206, %v85
    %v245 = vmul.f32 %v211, %v86
    %v246 = vmul.f32 %v216, %v87
    %v247 = vmul.f32 %v221, %v88
    %v248 = vmul.f32 %v226, %v89
    %v249 = vmul.f32 %v231, %v90
    %v250 = vmul.f32 %v236, %v91
    %v251 = vmul.f32 %v241, %v92
    %vm252 = vcmask 261120
    %v254 = vsel %vm252, %v77, 0
    %v257 = vsel %vm252, %v78, 0
    %v260 = vsel %vm252, %v79, 0
    %v263 = vsel %vm252, %v80, 0
    %v266 = vsel %vm252, %v81, 0
    %v269 = vsel %vm252, %v82, 0
    %v272 = vsel %vm252, %v83, 0
    %v275 = vsel %vm252, %v84, 0
    %277 = vmatprep.subr.mxu0 0.0
    %278 = vmatpush1.msra.mxu0 %v41
    %279 = vmatprep.subr.mxu0 0.0
    %280 = vmatpush1.msra.mxu0 %v42
    %281 = vmatprep.subr.mxu0 0.0
    %282 = vmatpush1.msra.mxu0 %v43
    %283 = vmatprep.subr.mxu0 0.0
    %284 = vmatpush1.msra.mxu0 %v44
    %285 = vmatprep.subr.mxu0 0.0
    %286 = vmatpush1.msra.mxu0 0.0
    %287 = vmatprep.subr.mxu0 0.0
    %288 = vmatpush1.msra.mxu0 0.0
    %289 = vmatprep.subr.mxu0 0.0
    %290 = vmatpush1.msra.mxu0 0.0
    %291 = vmatprep.subr.mxu0 0.0
    %292 = vmatpush1.msra.mxu0 0.0
    %293 = vmatprep.subr.mxu0 0.0
    %294 = vmatpush1.msra.mxu0 0.0
    %295 = vmatprep.subr.mxu0 0.0
    %296 = vmatpush1.msra.mxu0 0.0
    %297 = vmatprep.subr.mxu0 0.0
    %298 = vmatpush1.msra.mxu0 0.0
    %299 = vmatprep.subr.mxu0 0.0
    %300 = vmatpush1.msra.mxu0 0.0
    %301 = vmatprep.subr.mxu0 0.0
    %302 = vmatpush1.msra.mxu0 0.0
    %303 = vmatprep.subr.mxu0 0.0
    %304 = vmatpush1.msra.mxu0 0.0
    %305 = vmatprep.subr.mxu0 0.0
    %306 = vmatpush1.msra.mxu0 0.0
    %307 = vmatprep.subr.mxu0 0.0
    %308 = vmatpush1.msra.mxu0 0.0
    %309 = vmatprep.subr.mxu0 0.0
    %310 = vmatpush1.msra.mxu0 0.0
    %311 = vmatprep.subr.mxu0 0.0
    %312 = vmatpush1.msra.mxu0 0.0
    %313 = vmatprep.subr.mxu0 0.0
    %314 = vmatpush1.msra.mxu0 0.0
    %315 = vmatprep.subr.mxu0 0.0
    %316 = vmatpush1.msra.mxu0 0.0
    %317 = vmatprep.subr.mxu0 0.0
    %318 = vmatpush1.msra.mxu0 0.0
    %319 = vmatprep.subr.mxu0 0.0
    %320 = vmatpush1.msra.mxu0 0.0
    %321 = vmatprep.subr.mxu0 0.0
    %322 = vmatpush1.msra.mxu0 0.0
    %323 = vmatprep.subr.mxu0 0.0
    %324 = vmatpush1.msra.mxu0 0.0
    %325 = vmatprep.subr.mxu0 0.0
    %326 = vmatpush1.msra.mxu0 0.0
    %327 = vmatprep.subr.mxu0 0.0
    %328 = vmatpush1.msra.mxu0 0.0
    %329 = vmatprep.subr.mxu0 0.0
    %330 = vmatpush1.msra.mxu0 0.0
    %331 = vmatprep.subr.mxu0 0.0
    %332 = vmatpush1.msra.mxu0 0.0
    %333 = vmatprep.subr.mxu0 0.0
    %334 = vmatpush1.msra.mxu0 0.0
    %335 = vmatprep.subr.mxu0 0.0
    %336 = vmatpush1.msra.mxu0 0.0
    %337 = vmatprep.subr.mxu0 0.0
    %338 = vmatpush1.msra.mxu0 0.0
    %339 = vmatprep.subr.mxu0 0.0
    %340 = vmatpush1.msra.mxu0 0.0
    %341 = vmatprep.mubr.f32.mxu0 0.0
    %342 = vmatmul.mubr.f32.gmra.mrb[0].mxu0 %v254
    %v343 = vpop.f32.mrb[0].mxu0
    %v344 = vadd.f32 0.0, %v343
    %v345 = vpop.f32.mrb[0].mxu0
    %346 = vmatprep.mubr.f32.mxu0 0.0
    %347 = vmatmul.mubr.f32.gmra.mrb[0].mxu0 %v257
    %v348 = vpop.f32.mrb[0].mxu0
    %v349 = vadd.f32 0.0, %v348
    %v350 = vpop.f32.mrb[0].mxu0
    %351 = vmatprep.mubr.f32.mxu0 0.0
    %352 = vmatmul.mubr.f32.gmra.mrb[0].mxu0 %v260
    %v353 = vpop.f32.mrb[0].mxu0
    %v354 = vadd.f32 0.0, %v353
    %v355 = vpop.f32.mrb[0].mxu0
    %356 = vmatprep.mubr.f32.mxu0 0.0
    %357 = vmatmul.mubr.f32.gmra.mrb[0].mxu0 %v263
    %v358 = vpop.f32.mrb[0].mxu0
    %v359 = vadd.f32 0.0, %v358
    %v360 = vpop.f32.mrb[0].mxu0
    %361 = vmatprep.mubr.f32.mxu0 0.0
    %362 = vmatmul.mubr.f32.gmra.mrb[0].mxu0 %v266
    %v363 = vpop.f32.mrb[0].mxu0
    %v364 = vadd.f32 0.0, %v363
    %v365 = vpop.f32.mrb[0].mxu0
    %366 = vmatprep.mubr.f32.mxu0 0.0
    %367 = vmatmul.mubr.f32.gmra.mrb[0].mxu0 %v269
    %v368 = vpop.f32.mrb[0].mxu0
    %v369 = vadd.f32 0.0, %v368
    %v370 = vpop.f32.mrb[0].mxu0
    %371 = vmatprep.mubr.f32.mxu0 0.0
    %372 = vmatmul.mubr.f32.gmra.mrb[0].mxu0 %v272
    %v373 = vpop.f32.mrb[0].mxu0
    %v374 = vadd.f32 0.0, %v373
    %v375 = vpop.f32.mrb[0].mxu0
    %376 = vmatprep.mubr.f32.mxu0 0.0
    %377 = vmatmul.mubr.f32.gmra.mrb[0].mxu0 %v275
    %v378 = vpop.f32.mrb[0].mxu0
    %v379 = vadd.f32 0.0, %v378
    %v380 = vpop.f32.mrb[0].mxu0
    %381 = vdwg.mxu0
    %v382 = vmul.f32 %v344, %v61
    %v383 = vmul.f32 %v349, %v62
    %v384 = vmul.f32 %v354, %v63
    %v385 = vmul.f32 %v359, %v64
    %v386 = vmul.f32 %v364, %v65
    %v387 = vmul.f32 %v369, %v66
    %v388 = vmul.f32 %v374, %v67
    %v389 = vmul.f32 %v379, %v68
    %v390 = vadd.f32 %v382, %v69
    %v391 = vadd.f32 %v383, %v70
    %v392 = vadd.f32 %v384, %v71
    %v393 = vadd.f32 %v385, %v72
    %v394 = vadd.f32 %v386, %v73
    %v395 = vadd.f32 %v387, %v74
    %v396 = vadd.f32 %v388, %v75
    %v397 = vadd.f32 %v389, %v76
    %s398 = sld [smem:[#allocation2]]
    %v399 = vstv %s398
    %v400 = vmul.f32 %v399, %v45
    %v401 = vmul.f32 %v399, %v46
    %s402 = sld [smem:[#allocation2 + $0x1]]
    %v403 = vstv %s402
    %v404 = vmul.f32 %v403, %v47
    %v405 = vmul.f32 %v403, %v48
    %v406 = vadd.f32 %v400, %v404
    %v407 = vadd.f32 %v401, %v405
    %s408 = sld [smem:[#allocation2 + $0x2]]
    %v409 = vstv %s408
    %v410 = vmul.f32 %v409, %v49
    %v411 = vmul.f32 %v409, %v50
    %v412 = vadd.f32 %v406, %v410
    %v413 = vadd.f32 %v407, %v411
    %v414 = vadd.f32 %v412, %v51
    %v415 = vadd.f32 %v413, %v52
    %v417 = vsel %vm98, %v196, 0
    %v420 = vsel %vm98, %v201, 0
    %422 = vmatprep.subr.mxu0 0.0
    %423 = vmatpush1.msra.mxu0 %v390
    %424 = vmatprep.subr.mxu0 0.0
    %425 = vmatpush1.msra.mxu0 %v391
    %426 = vmatprep.subr.mxu0 0.0
    %427 = vmatpush1.msra.mxu0 %v392
    %428 = vmatprep.subr.mxu0 0.0
    %429 = vmatpush1.msra.mxu0 %v393
    %430 = vmatprep.subr.mxu0 0.0
    %431 = vmatpush1.msra.mxu0 %v394
    %432 = vmatprep.subr.mxu0 0.0
    %433 = vmatpush1.msra.mxu0 %v395
    %434 = vmatprep.subr.mxu0 0.0
    %435 = vmatpush1.msra.mxu0 %v396
    %436 = vmatprep.subr.mxu0 0.0
    %437 = vmatpush1.msra.mxu0 %v397
    %438 = vmatprep.subr.mxu0 0.0
    %439 = vmatpush1.msra.mxu0 0.0
    %440 = vmatprep.subr.mxu0 0.0
    %441 = vmatpush1.msra.mxu0 0.0
    %442 = vmatprep.subr.mxu0 0.0
    %443 = vmatpush1.msra.mxu0 0.0
    %444 = vmatprep.subr.mxu0 0.0
    %445 = vmatpush1.msra.mxu0 0.0
    %446 = vmatprep.subr.mxu0 0.0
    %447 = vmatpush1.msra.mxu0 0.0
    %448 = vmatprep.subr.mxu0 0.0
    %449 = vmatpush1.msra.mxu0 0.0
    %450 = vmatprep.subr.mxu0 0.0
    %451 = vmatpush1.msra.mxu0 0.0
    %452 = vmatprep.subr.mxu0 0.0
    %453 = vmatpush1.msra.mxu0 0.0
    %454 = vmatprep.subr.mxu0 0.0
    %455 = vmatpush1.msra.mxu0 0.0
    %456 = vmatprep.subr.mxu0 0.0
    %457 = vmatpush1.msra.mxu0 0.0
    %458 = vmatprep.subr.mxu0 0.0
    %459 = vmatpush1.msra.mxu0 0.0
    %460 = vmatprep.subr.mxu0 0.0
    %461 = vmatpush1.msra.mxu0 0.0
    %462 = vmatprep.subr.mxu0 0.0
    %463 = vmatpush1.msra.mxu0 0.0
    %464 = vmatprep.subr.mxu0 0.0
    %465 = vmatpush1.msra.mxu0 0.0
    %466 = vmatprep.subr.mxu0 0.0
    %467 = vmatpush1.msra.mxu0 0.0
    %468 = vmatprep.subr.mxu0 0.0
    %469 = vmatpush1.msra.mxu0 0.0
    %470 = vmatprep.subr.mxu0 0.0
    %471 = vmatpush1.msra.mxu0 0.0
    %472 = vmatprep.subr.mxu0 0.0
    %473 = vmatpush1.msra.mxu0 0.0
    %474 = vmatprep.subr.mxu0 0.0
    %475 = vmatpush1.msra.mxu0 0.0
    %476 = vmatprep.subr.mxu0 0.0
    %477 = vmatpush1.msra.mxu0 0.0
    %478 = vmatprep.subr.mxu0 0.0
    %479 = vmatpush1.msra.mxu0 0.0
    %480 = vmatprep.subr.mxu0 0.0
    %481 = vmatpush1.msra.mxu0 0.0
    %482 = vmatprep.subr.mxu0 0.0
    %483 = vmatpush1.msra.mxu0 0.0
    %484 = vmatprep.subr.mxu0 0.0
    %485 = vmatpush1.msra.mxu0 0.0
    %486 = vmatprep.mubr.f32.mxu0 0.0
    %487 = vmatmul.mubr.f32.gmra.mrb[0].mxu0 %v417
    %v488 = vpop.f32.mrb[0].mxu0
    %v489 = vadd.f32 %v414, %v488
    %v490 = vpop.f32.mrb[0].mxu0
    %491 = vmatprep.mubr.f32.mxu0 0.0
    %492 = vmatmul.mubr.f32.gmra.mrb[0].mxu0 %v420
    %v493 = vpop.f32.mrb[0].mxu0
    %v494 = vadd.f32 %v415, %v493
    %v495 = vpop.f32.mrb[0].mxu0
    %496 = vdwg.mxu0
    %v497 = vsel %vm98, %v489, -inf
    %498 = vmax.xlane.f32.xlu0 %v497
    %v499 = vpop.xlane.xlu0 %498
    %v500 = vsel %vm98, %v494, -inf
    %501 = vmax.xlane.f32.xlu0 %v500
    %v502 = vpop.xlane.xlu0 %501
    %v503 = vsub.f32 %v489, %v499
    %v504 = vsub.f32 %v494, %v502
    %v505 = vmul.f32 %v503, 1.442695
    %v506 = vpow.pop %v505
    %v507 = vmul.f32 %v504, 1.442695
    %v508 = vpow.pop %v507
    %v510 = vsel %vm98, %v506, 0
    %v513 = vsel %vm98, %v508, 0
    %515 = vmatprep.subr.mxu0 0.0
    %516 = vmatpush1.msra.mxu0 %v85
    %517 = vmatprep.subr.mxu0 0.0
    %518 = vmatpush1.msra.mxu0 %v86
    %519 = vmatprep.subr.mxu0 0.0
    %520 = vmatpush1.msra.mxu0 %v87
    %521 = vmatprep.subr.mxu0 0.0
    %522 = vmatpush1.msra.mxu0 %v88
    %523 = vmatprep.subr.mxu0 0.0
    %524 = vmatpush1.msra.mxu0 %v89
    %525 = vmatprep.subr.mxu0 0.0
    %526 = vmatpush1.msra.mxu0 %v90
    %527 = vmatprep.subr.mxu0 0.0
    %528 = vmatpush1.msra.mxu0 %v91
    %529 = vmatprep.subr.mxu0 0.0
    %530 = vmatpush1.msra.mxu0 %v92
    %531 = vmatprep.subr.mxu0 0.0
    %532 = vmatpush1.msra.mxu0 0.0
    %533 = vmatprep.subr.mxu0 0.0
    %534 = vmatpush1.msra.mxu0 0.0
    %535 = vmatprep.subr.mxu0 0.0
    %536 = vmatpush1.msra.mxu0 0.0
    %537 = vmatprep.subr.mxu0 0.0
    %538 = vmatpush1.msra.mxu0 0.0
    %539 = vmatprep.subr.mxu0 0.0
    %540 = vmatpush1.msra.mxu0 0.0
    %541 = vmatprep.subr.mxu0 0.0
    %542 = vmatpush1.msra.mxu0 0.0
    %543 = vmatprep.subr.mxu0 0.0
    %544 = vmatpush1.msra.mxu0 0.0
    %545 = vmatprep.subr.mxu0 0.0
    %546 = vmatpush1.msra.mxu0 0.0
    %547 = vmatprep.subr.mxu0 0.0
    %548 = vmatpush1.msra.mxu0 0.0
    %549 = vmatprep.subr.mxu0 0.0
    %550 = vmatpush1.msra.mxu0 0.0
    %551 = vmatprep.subr.mxu0 0.0
    %552 = vmatpush1.msra.mxu0 0.0
    %553 = vmatprep.subr.mxu0 0.0
    %554 = vmatpush1.msra.mxu0 0.0
    %555 = vmatprep.subr.mxu0 0.0
    %556 = vmatpush1.msra.mxu0 0.0
    %557 = vmatprep.subr.mxu0 0.0
    %558 = vmatpush1.msra.mxu0 0.0
    %559 = vmatprep.subr.mxu0 0.0
    %560 = vmatpush1.msra.mxu0 0.0
    %561 = vmatprep.subr.mxu0 0.0
    %562 = vmatpush1.msra.mxu0 0.0
    %563 = vmatprep.subr.mxu0 0.0
    %564 = vmatpush1.msra.mxu0 0.0
    %565 = vmatprep.subr.mxu0 0.0
    %566 = vmatpush1.msra.mxu0 0.0
    %567 = vmatprep.subr.mxu0 0.0
    %568 = vmatpush1.msra.mxu0 0.0
    %569 = vmatprep.subr.mxu0 0.0
    %570 = vmatpush1.msra.mxu0 0.0
    %571 = vmatprep.subr.mxu0 0.0
    %572 = vmatpush1.msra.mxu0 0.0
    %573 = vmatprep.subr.mxu0 0.0
    %574 = vmatpush1.msra.mxu0 0.0
    %575 = vmatprep.subr.mxu0 0.0
    %576 = vmatpush1.msra.mxu0 0.0
    %577 = vmatprep.subr.mxu0 0.0
    %578 = vmatpush1.msra.mxu0 0.0
    %579 = vmatprep.mubr.f32.mxu0 0.0
    %580 = vmatmul.mubr.f32.gmra.mrb[0].mxu0 %v510
    %v581 = vpop.f32.mrb[0].mxu0
    %v582 = vadd.f32 0.0, %v581
    %v583 = vpop.f32.mrb[0].mxu0
    %584 = vmatprep.mubr.f32.mxu0 0.0
    %585 = vmatmul.mubr.f32.gmra.mrb[0].mxu0 %v513
    %v586 = vpop.f32.mrb[0].mxu0
    %v587 = vadd.f32 0.0, %v586
    %v588 = vpop.f32.mrb[0].mxu0
    %589 = vdwg.mxu0
    %590 = vmatprep.subr.mxu0 0.0
    %591 = vmatpush1.msra.mxu0 %v244
    %592 = vmatprep.subr.mxu0 0.0
    %593 = vmatpush1.msra.mxu0 %v245
    %594 = vmatprep.subr.mxu0 0.0
    %595 = vmatpush1.msra.mxu0 %v246
    %596 = vmatprep.subr.mxu0 0.0
    %597 = vmatpush1.msra.mxu0 %v247
    %598 = vmatprep.subr.mxu0 0.0
    %599 = vmatpush1.msra.mxu0 %v248
    %600 = vmatprep.subr.mxu0 0.0
    %601 = vmatpush1.msra.mxu0 %v249
    %602 = vmatprep.subr.mxu0 0.0
    %603 = vmatpush1.msra.mxu0 %v250
    %604 = vmatprep.subr.mxu0 0.0
    %605 = vmatpush1.msra.mxu0 %v251
    %606 = vmatprep.subr.mxu0 0.0
    %607 = vmatpush1.msra.mxu0 0.0
    %608 = vmatprep.subr.mxu0 0.0
    %609 = vmatpush1.msra.mxu0 0.0
    %610 = vmatprep.subr.mxu0 0.0
    %611 = vmatpush1.msra.mxu0 0.0
    %612 = vmatprep.subr.mxu0 0.0
    %613 = vmatpush1.msra.mxu0 0.0
    %614 = vmatprep.subr.mxu0 0.0
    %615 = vmatpush1.msra.mxu0 0.0
    %616 = vmatprep.subr.mxu0 0.0
    %617 = vmatpush1.msra.mxu0 0.0
    %618 = vmatprep.subr.mxu0 0.0
    %619 = vmatpush1.msra.mxu0 0.0
    %620 = vmatprep.subr.mxu0 0.0
    %621 = vmatpush1.msra.mxu0 0.0
    %622 = vmatprep.subr.mxu0 0.0
    %623 = vmatpush1.msra.mxu0 0.0
    %624 = vmatprep.subr.mxu0 0.0
    %625 = vmatpush1.msra.mxu0 0.0
    %626 = vmatprep.subr.mxu0 0.0
    %627 = vmatpush1.msra.mxu0 0.0
    %628 = vmatprep.subr.mxu0 0.0
    %629 = vmatpush1.msra.mxu0 0.0
    %630 = vmatprep.subr.mxu0 0.0
    %631 = vmatpush1.msra.mxu0 0.0
    %632 = vmatprep.subr.mxu0 0.0
    %633 = vmatpush1.msra.mxu0 0.0
    %634 = vmatprep.subr.mxu0 0.0
    %635 = vmatpush1.msra.mxu0 0.0
    %636 = vmatprep.subr.mxu0 0.0
    %637 = vmatpush1.msra.mxu0 0.0
    %638 = vmatprep.subr.mxu0 0.0
    %639 = vmatpush1.msra.mxu0 0.0
    %640 = vmatprep.subr.mxu0 0.0
    %641 = vmatpush1.msra.mxu0 0.0
    %642 = vmatprep.subr.mxu0 0.0
    %643 = vmatpush1.msra.mxu0 0.0
    %644 = vmatprep.subr.mxu0 0.0
    %645 = vmatpush1.msra.mxu0 0.0
    %646 = vmatprep.subr.mxu0 0.0
    %647 = vmatpush1.msra.mxu0 0.0
    %648 = vmatprep.subr.mxu0 0.0
    %649 = vmatpush1.msra.mxu0 0.0
    %650 = vmatprep.subr.mxu0 0.0
    %651 = vmatpush1.msra.mxu0 0.0
    %652 = vmatprep.subr.mxu0 0.0
    %653 = vmatpush1.msra.mxu0 0.0
    %654 = vmatprep.mubr.f32.mxu0 0.0
    %655 = vmatmul.mubr.f32.gmra.mrb[0].mxu0 %v510
    %v656 = vpop.f32.mrb[0].mxu0
    %v657 = vadd.f32 0.0, %v656
    %v658 = vpop.f32.mrb[0].mxu0
    %659 = vmatprep.mubr.f32.mxu0 0.0
    %660 = vmatmul.mubr.f32.gmra.mrb[0].mxu0 %v513
    %v661 = vpop.f32.mrb[0].mxu0
    %v662 = vadd.f32 0.0, %v661
    %v663 = vpop.f32.mrb[0].mxu0
    %664 = vdwg.mxu0
    %v665 = vrcp.pop %v582
    %v666 = vrcp.pop %v587
    %v667 = vmul.f32 %v657, %v665
    %v668 = vmul.f32 %v662, %v666
    %v669 = vlaneseq
    %v670 = vshrl.u32 %v669, 7
    %v671 = vsub.s32 0, %v670
    %v672 = vrot.slane %v97, %v671
    %v674 = vsel %vm252, %v667, 0
    %v677 = vsel %vm252, %v668, 0
    %679 = vmatprep.subr.mxu0 0.0
    %680 = vmatpush1.msra.mxu0 %v93
    %681 = vmatprep.subr.mxu0 0.0
    %682 = vmatpush1.msra.mxu0 %v94
    %683 = vmatprep.subr.mxu0 0.0
    %684 = vmatpush1.msra.mxu0 %v95
    %685 = vmatprep.subr.mxu0 0.0
    %686 = vmatpush1.msra.mxu0 %v96
    %687 = vmatprep.subr.mxu0 0.0
    %688 = vmatpush1.msra.mxu0 0.0
    %689 = vmatprep.subr.mxu0 0.0
    %690 = vmatpush1.msra.mxu0 0.0
    %691 = vmatprep.subr.mxu0 0.0
    %692 = vmatpush1.msra.mxu0 0.0
    %693 = vmatprep.subr.mxu0 0.0
    %694 = vmatpush1.msra.mxu0 0.0
    %695 = vmatprep.subr.mxu0 0.0
    %696 = vmatpush1.msra.mxu0 0.0
    %697 = vmatprep.subr.mxu0 0.0
    %698 = vmatpush1.msra.mxu0 0.0
    %699 = vmatprep.subr.mxu0 0.0
    %700 = vmatpush1.msra.mxu0 0.0
    %701 = vmatprep.subr.mxu0 0.0
    %702 = vmatpush1.msra.mxu0 0.0
    %703 = vmatprep.subr.mxu0 0.0
    %704 = vmatpush1.msra.mxu0 0.0
    %705 = vmatprep.subr.mxu0 0.0
    %706 = vmatpush1.msra.mxu0 0.0
    %707 = vmatprep.subr.mxu0 0.0
    %708 = vmatpush1.msra.mxu0 0.0
    %709 = vmatprep.subr.mxu0 0.0
    %710 = vmatpush1.msra.mxu0 0.0
    %711 = vmatprep.subr.mxu0 0.0
    %712 = vmatpush1.msra.mxu0 0.0
    %713 = vmatprep.subr.mxu0 0.0
    %714 = vmatpush1.msra.mxu0 0.0
    %715 = vmatprep.subr.mxu0 0.0
    %716 = vmatpush1.msra.mxu0 0.0
    %717 = vmatprep.subr.mxu0 0.0
    %718 = vmatpush1.msra.mxu0 0.0
    %719 = vmatprep.subr.mxu0 0.0
    %720 = vmatpush1.msra.mxu0 0.0
    %721 = vmatprep.subr.mxu0 0.0
    %722 = vmatpush1.msra.mxu0 0.0
    %723 = vmatprep.subr.mxu0 0.0
    %724 = vmatpush1.msra.mxu0 0.0
    %725 = vmatprep.subr.mxu0 0.0
    %726 = vmatpush1.msra.mxu0 0.0
    %727 = vmatprep.subr.mxu0 0.0
    %728 = vmatpush1.msra.mxu0 0.0
    %729 = vmatprep.subr.mxu0 0.0
    %730 = vmatpush1.msra.mxu0 0.0
    %731 = vmatprep.subr.mxu0 0.0
    %732 = vmatpush1.msra.mxu0 0.0
    %733 = vmatprep.subr.mxu0 0.0
    %734 = vmatpush1.msra.mxu0 0.0
    %735 = vmatprep.subr.mxu0 0.0
    %736 = vmatpush1.msra.mxu0 0.0
    %737 = vmatprep.subr.mxu0 0.0
    %738 = vmatpush1.msra.mxu0 0.0
    %739 = vmatprep.subr.mxu0 0.0
    %740 = vmatpush1.msra.mxu0 0.0
    %741 = vmatprep.subr.mxu0 0.0
    %742 = vmatpush1.msra.mxu0 0.0
    %743 = vmatprep.mubr.f32.mxu0 0.0
    %744 = vmatmul.mubr.f32.gmra.mrb[0].mxu0 %v674
    %v745 = vpop.f32.mrb[0].mxu0
    %v746 = vadd.f32 %v672, %v745
    %v747 = vpop.f32.mrb[0].mxu0
    %748 = vmatprep.mubr.f32.mxu0 0.0
    %749 = vmatmul.mubr.f32.gmra.mrb[0].mxu0 %v677
    %v750 = vpop.f32.mrb[0].mxu0
    %v751 = vadd.f32 %v672, %v750
    %v752 = vpop.f32.mrb[0].mxu0
    %753 = vdwg.mxu0
    %754 = vst.msk [vmem:[#allocation5] sm:$0xff] %vm252, %v746
    %755 = vst.msk [vmem:[#allocation5 + $0x8] sm:$0xff] %vm252, %v751
    // Predicated region
    $region22: #{node_mha_forward.1} parent=1 // pred_check
      _
    $region23: #{node_mha_forward.1} parent=1 // pred_check_branch
      %757 = sbr.rel (0) target = $region25
    $region24: #{node_mha_forward.1} parent=1 // pred_region
      %s759 = ssub.s32 256, 256
      %760 = vsyncadd [#allocation3], %s759
      %s761 = sshll.u32 [#allocation5], 4
      %s762 = int_to_ptr.vmem [resolvable:$true] %s761
      %767 = dma.vmem_to_hbm [thread:$0]  %s762, 256, %s4, [#allocation3], 128, 128, 8
    $region25: #{node_mha_forward.1} parent=1 // pred_fallthru
      _
    // Predicated region
    $region26: #{node_mha_forward.1} parent=1 // pred_check
      _
    $region27: #{node_mha_forward.1} parent=1 // pred_check_branch
      %769 = sbr.rel (0) target = $region29
    $region28: #{node_mha_forward.1} parent=1 // pred_region
      %770 = dma.done [#allocation3], 256
    $region29: #{node_mha_forward.1} parent=1 // pred_fallthru
      _
    %771 = vsyncpa [#allocation3], 1
    %772 = vsyncpa [#allocation4], 1

</llo_original>
